<compile_context>
chip_gen: v7x
topology: tpu7x:2x2x1
jax: 0.10.0
libtpu: 0.0.40
codegen_flags: <defaults>
</compile_context>

<pallas_src>
import jax
import jax.numpy as jnp
from jax.experimental import pallas as pl
from jax.experimental.pallas import tpu as pltpu

HIDDEN = 40   # hidden_units in the PyTorch module
LANE = 128    # TPU vreg lane width


def _mlp_kernel(x_ref, w1_ref, b1_ref, w2_ref, b2_ref, w3_ref, b3_ref, o_ref):
    x = x_ref[...]                                            # (1, B): batch on lanes
    # fc1 + ReLU: rank-1 (in_features=1) layer -> VPU broadcast FMA, no MXU.
    h = jnp.maximum(w1_ref[...] * x + b1_ref[...], 0.0)      # (H, B)
    # fc2 + ReLU: (H, H) @ (H, B) on the MXU; N = B_tile is lane-dense and wide.
    h = jnp.dot(w2_ref[...], h, preferred_element_type=jnp.float32)
    h = jnp.maximum(h + b2_ref[...], 0.0)                    # (H, B)
    # fc3: out_features=1 -> sublane (XLU) reduction instead of a 1-wide matmul.
    out = jnp.sum(w3_ref[...] * h, axis=0, keepdims=True) + b3_ref[...]
    o_ref[...] = out.astype(o_ref.dtype)                     # (1, B) lane-dense store


def simple_nn_forward(x, params, *, tile_b=None):
    """Fused Linear->ReLU->Linear->ReLU->Linear. x: (N, 1) float32 -> (N, 1)."""
    N, in_dim = x.shape
    assert in_dim == 1

    if tile_b is None:
        # Each tile is only ~B*4 bytes of I/O plus a (40, B) activation, so VMEM
        # is never the limit.  Prefer larger tiles (fewer ~0.35us grid-step
        # overheads, better MXU N-utilization) while keeping >= ~4 pipelined
        # steps for double-buffering / megacore sharding when N is large.
        tile_b = min(4096, pl.next_power_of_2(pl.cdiv(N, 4)))
    tile_b = max(LANE, (tile_b // LANE) * LANE)   # lane-dense: multiple of 128

    # Pad the batch to a whole number of tiles; padded rows are sliced off after.
    n_pad = pl.cdiv(N, tile_b) * tile_b
    x_row = jnp.pad(x.reshape(-1), (0, n_pad - N)).reshape(1, n_pad)

    w1, b1 = params["w1"], params["b1"]   # (H, 1), (H, 1)
    w2, b2 = params["w2"], params["b2"]   # (H, H) = (out, in), (H, 1)
    w3, b3 = params["w3"], params["b3"]   # (H, 1), (1, 1)

    grid = (n_pad // tile_b,)
    # Weights/biases are tiny: full-array blocks with a constant index_map, so
    # they are DMA'd once and stay resident in VMEM across all grid steps.
    full = lambda a: pl.BlockSpec(a.shape, lambda i: (0, 0))

    out_row = pl.pallas_call(
        _mlp_kernel,
        out_shape=jax.ShapeDtypeStruct((1, n_pad), x.dtype),
        grid_spec=pltpu.PrefetchScalarGridSpec(
            num_scalar_prefetch=0,
            grid=grid,
            in_specs=[
                pl.BlockSpec((1, tile_b), lambda i: (0, i)),  # x batch tile (lane-dense)
                full(w1), full(b1), full(w2), full(b2), full(w3), full(b3),
            ],
            out_specs=pl.BlockSpec((1, tile_b), lambda i: (0, i)),
        ),
        compiler_params=pltpu.CompilerParams(
            dimension_semantics=("parallel",),   # batch tiles shard across TCs on v7x
        ),
    )(x_row, w1, b1, w2, b2, w3, b3)

    return out_row.reshape(n_pad, 1)[:N]


def init_params(key):
    """PyTorch-style uniform init, stored in the batch-on-lanes kernel layout:

       w1: (H, 1)  == PyTorch fc1.weight (out=H, in=1)
       w2: (H, H)  == PyTorch fc2.weight (out, in)
       w3: (H, 1)  == PyTorch fc3.weight.T  (in=H, out=1)
       biases as column vectors (H, 1) / (1, 1).
    """
    k1, k2, k3, k4, k5, k6 = jax.random.split(key, 6)

    def uniform(k, shape, fan_in):
        bound = 1.0 / jnp.sqrt(jnp.float32(fan_in))
        return jax.random.uniform(k, shape, jnp.float32, -bound, bound)

    return {
        "w1": uniform(k1, (HIDDEN, 1), 1),
        "b1": uniform(k2, (HIDDEN, 1), 1),
        "w2": uniform(k3, (HIDDEN, HIDDEN), HIDDEN),
        "b2": uniform(k4, (HIDDEN, 1), HIDDEN),
        "w3": uniform(k5, (HIDDEN, 1), HIDDEN),
        "b3": uniform(k6, (1, 1), HIDDEN),
    }


def reference_forward(x, p):
    """Pure-JAX reference (standard batch-major math) for correctness checking."""
    h = jnp.maximum(x @ p["w1"].T + p["b1"].T, 0.0)   # (N, H)
    h = jnp.maximum(h @ p["w2"].T + p["b2"].T, 0.0)   # (N, H)
    return h @ p["w3"] + p["b3"].T                    # (N, 1)


if __name__ == "__main__":
    key = jax.random.PRNGKey(0)
    kp, kx = jax.random.split(key)
    params = init_params(kp)

    N = 1000  # small batch; not a multiple of 128, exercises the padding path
    x = jax.random.normal(kx, (N, 1), jnp.float32)

    out = simple_nn_forward(x, params)
    out = jax.block_until_ready(out)

    ref = reference_forward(x, params)
    assert out.shape == (N, 1)
    assert jnp.allclose(out, ref, atol=1e-5, rtol=1e-5), "mismatch vs reference"

    print("KERNEL_OK")
</pallas_src>

<mosaic_0001>
module attributes {stable_mosaic.version = 11 : i64} {
  func.func @_mlp_kernel(%arg0: i32, %arg1: memref<1x256xf32, #tpu.memory_space<vmem>>, %arg2: memref<40x1xf32, #tpu.memory_space<vmem>>, %arg3: memref<40x1xf32, #tpu.memory_space<vmem>>, %arg4: memref<40x40xf32, #tpu.memory_space<vmem>>, %arg5: memref<40x1xf32, #tpu.memory_space<vmem>>, %arg6: memref<40x1xf32, #tpu.memory_space<vmem>>, %arg7: memref<1x1xf32, #tpu.memory_space<vmem>>, %arg8: memref<1x256xf32, #tpu.memory_space<vmem>>) attributes {dimension_semantics = [#tpu.dimension_semantics<parallel>], iteration_bounds = array<i64: 4>, scalar_prefetch = 0 : i64, scratch_operands = 0 : i64, tpu.core_type = #tpu.core_type<tc>, window_params = [{transform_indices = @transform_0, window_bounds = array<i64: 1, 256>}, {pipeline_mode = #tpu.pipeline_mode<synchronous>, transform_indices = @transform_1, window_bounds = array<i64: 40, 1>}, {pipeline_mode = #tpu.pipeline_mode<synchronous>, transform_indices = @transform_2, window_bounds = array<i64: 40, 1>}, {pipeline_mode = #tpu.pipeline_mode<synchronous>, transform_indices = @transform_3, window_bounds = array<i64: 40, 40>}, {pipeline_mode = #tpu.pipeline_mode<synchronous>, transform_indices = @transform_4, window_bounds = array<i64: 40, 1>}, {pipeline_mode = #tpu.pipeline_mode<synchronous>, transform_indices = @transform_5, window_bounds = array<i64: 40, 1>}, {pipeline_mode = #tpu.pipeline_mode<synchronous>, transform_indices = @transform_6, window_bounds = array<i64: 1, 1>}, {transform_indices = @transform_7, window_bounds = array<i64: 1, 256>}]} {
    %c0 = arith.constant 0 : index
    %c0_0 = arith.constant 0 : index
    %0 = vector.load %arg1[%c0, %c0_0] : memref<1x256xf32, #tpu.memory_space<vmem>>, vector<1x256xf32>
    %c0_1 = arith.constant 0 : index
    %c0_2 = arith.constant 0 : index
    %1 = vector.load %arg2[%c0_1, %c0_2] : memref<40x1xf32, #tpu.memory_space<vmem>>, vector<40x1xf32>
    %2 = vector.broadcast %1 : vector<40x1xf32> to vector<40x256xf32>
    %3 = vector.broadcast %0 : vector<1x256xf32> to vector<40x256xf32>
    %4 = arith.mulf %2, %3 : vector<40x256xf32>
    %c0_3 = arith.constant 0 : index
    %c0_4 = arith.constant 0 : index
    %5 = vector.load %arg3[%c0_3, %c0_4] : memref<40x1xf32, #tpu.memory_space<vmem>>, vector<40x1xf32>
    %6 = vector.broadcast %5 : vector<40x1xf32> to vector<40x256xf32>
    %7 = arith.addf %4, %6 : vector<40x256xf32>
    %cst = arith.constant 0.000000e+00 : f32
    %8 = vector.broadcast %cst : f32 to vector<40x256xf32>
    %9 = arith.maximumf %7, %8 : vector<40x256xf32>
    %c0_5 = arith.constant 0 : index
    %c0_6 = arith.constant 0 : index
    %10 = vector.load %arg4[%c0_5, %c0_6] : memref<40x40xf32, #tpu.memory_space<vmem>>, vector<40x40xf32>
    %cst_7 = arith.constant dense<0.000000e+00> : vector<40x256xf32>
    %11 = tpu.matmul %10, %9, %cst_7 {dimension_numbers = #tpu.dot_dimension_numbers<[1], [0], [0], [1], [0, 0, 1, 1], [], []>} : vector<40x40xf32>, vector<40x256xf32>, vector<40x256xf32> -> vector<40x256xf32>
    %c0_8 = arith.constant 0 : index
    %c0_9 = arith.constant 0 : index
    %12 = vector.load %arg5[%c0_8, %c0_9] : memref<40x1xf32, #tpu.memory_space<vmem>>, vector<40x1xf32>
    %13 = vector.broadcast %12 : vector<40x1xf32> to vector<40x256xf32>
    %14 = arith.addf %11, %13 : vector<40x256xf32>
    %cst_10 = arith.constant 0.000000e+00 : f32
    %15 = vector.broadcast %cst_10 : f32 to vector<40x256xf32>
    %16 = arith.maximumf %14, %15 : vector<40x256xf32>
    %c0_11 = arith.constant 0 : index
    %c0_12 = arith.constant 0 : index
    %17 = vector.load %arg6[%c0_11, %c0_12] : memref<40x1xf32, #tpu.memory_space<vmem>>, vector<40x1xf32>
    %18 = vector.broadcast %17 : vector<40x1xf32> to vector<40x256xf32>
    %19 = arith.mulf %18, %16 : vector<40x256xf32>
    %cst_13 = arith.constant dense<0.000000e+00> : vector<256xf32>
    %20 = vector.multi_reduction <add>, %19, %cst_13 [0] : vector<40x256xf32> to vector<256xf32>
    %21 = vector.shape_cast %20 : vector<256xf32> to vector<1x256xf32>
    %c0_14 = arith.constant 0 : index
    %c0_15 = arith.constant 0 : index
    %22 = vector.load %arg7[%c0_14, %c0_15] : memref<1x1xf32, #tpu.memory_space<vmem>>, vector<1x1xf32>
    %23 = vector.broadcast %22 : vector<1x1xf32> to vector<1x256xf32>
    %24 = arith.addf %21, %23 : vector<1x256xf32>
    %c0_16 = arith.constant 0 : index
    %c0_17 = arith.constant 0 : index
    %25 = vector.load %arg8[%c0_16, %c0_17] : memref<1x256xf32, #tpu.memory_space<vmem>>, vector<1x256xf32>
    tpu.vector_store %arg8[%c0_16, %c0_17], %24 {strides = array<i32>} : memref<1x256xf32, #tpu.memory_space<vmem>>, vector<1x256xf32>,
    return
  }
  func.func @transform_0(%arg0: i32) -> (i32, i32) {
    %c0_i32 = arith.constant 0 : i32
    %c0_i32_0 = arith.constant 0 : i32
    return %c0_i32, %arg0 : i32, i32
  }
  func.func @transform_1(%arg0: i32) -> (i32, i32) {
    %c0_i32 = arith.constant 0 : i32
    %c0_i32_0 = arith.constant 0 : i32
    %c0_i32_1 = arith.constant 0 : i32
    return %c0_i32, %c0_i32_0 : i32, i32
  }
  func.func @transform_2(%arg0: i32) -> (i32, i32) {
    %c0_i32 = arith.constant 0 : i32
    %c0_i32_0 = arith.constant 0 : i32
    %c0_i32_1 = arith.constant 0 : i32
    return %c0_i32, %c0_i32_0 : i32, i32
  }
  func.func @transform_3(%arg0: i32) -> (i32, i32) {
    %c0_i32 = arith.constant 0 : i32
    %c0_i32_0 = arith.constant 0 : i32
    %c0_i32_1 = arith.constant 0 : i32
    return %c0_i32, %c0_i32_0 : i32, i32
  }
  func.func @transform_4(%arg0: i32) -> (i32, i32) {
    %c0_i32 = arith.constant 0 : i32
    %c0_i32_0 = arith.constant 0 : i32
    %c0_i32_1 = arith.constant 0 : i32
    return %c0_i32, %c0_i32_0 : i32, i32
  }
  func.func @transform_5(%arg0: i32) -> (i32, i32) {
    %c0_i32 = arith.constant 0 : i32
    %c0_i32_0 = arith.constant 0 : i32
    %c0_i32_1 = arith.constant 0 : i32
    return %c0_i32, %c0_i32_0 : i32, i32
  }
  func.func @transform_6(%arg0: i32) -> (i32, i32) {
    %c0_i32 = arith.constant 0 : i32
    %c0_i32_0 = arith.constant 0 : i32
    %c0_i32_1 = arith.constant 0 : i32
    return %c0_i32, %c0_i32_0 : i32, i32
  }
  func.func @transform_7(%arg0: i32) -> (i32, i32) {
    %c0_i32 = arith.constant 0 : i32
    %c0_i32_0 = arith.constant 0 : i32
    return %c0_i32, %arg0 : i32, i32
  }
}

</mosaic_0001>

<llo_original>
// kernel: tpu_custom_call.1
$region0: #{tpu_custom_call.1}
  #allocation0 [shape = 'u32[]', space=smem, size = 0x4, offset = 0x4, fixed_abs, tag = 'smem constant byte address 0x4 - core index']
  #allocation1 [shape = 'u32[144,128]{1,0:T(1,128)}', space=vmem, size = 0x12000, scoped, tag = 'internal scratch']
  #allocation2 [shape = 'f32[1,1]{1,0:T(1,128)S(1)}', space=vmem, size = 0x200, scoped, tag = 'scoped memory for tpu_custom_call.1']
  %s0 = inlined_call_operand.vmem [shape: f32[1,1024], index: 0, kind: input, shape index: {}]
  %s1 = inlined_call_operand.vmem [shape: f32[40,1], index: 1, kind: input, shape index: {}]
  %s2 = inlined_call_operand.vmem [shape: f32[40,1], index: 2, kind: input, shape index: {}]
  %s3 = inlined_call_operand.vmem [shape: f32[40,40], index: 3, kind: input, shape index: {}]
  %s4 = inlined_call_operand.vmem [shape: f32[40,1], index: 4, kind: input, shape index: {}]
  %s5 = inlined_call_operand.vmem [shape: f32[40,1], index: 5, kind: input, shape index: {}]
  %s6 = inlined_call_operand.<no memory space> [shape: f32[1,1], index: 6, kind: input, shape index: {}]
  %s7 = inlined_call_operand.hbm [shape: f32[1,1024], index: 7, kind: output, shape index: {}]
  %s8 = sld [smem:[#allocation0]]
  $region61: #{tpu_custom_call.1} parent=0
    _
  %s10 = ssub.s32 1, %s8
  %s11 = scalar_select 0, %s10, %s8
  %v12 = vstv %s6
  %13 = vst [vmem:[#allocation2] sm:$0x1] %v12
  $region1: #{tpu_custom_call.1} parent=0
    #allocation3 [shape = 'u8[2048]{0}', space=vmem, size = 0x800, scoped, tag = 'output window, operand 0']
    #allocation4 [shape = 's32[2]{0}', space=sflag, size = 0x8, scoped, tag = 'scoped memory for tpu_custom_call.1']
    %14 = vsyncpa [#allocation4], 0
    %s15 = scalar_lea.sflag [#allocation4], 1
    %16 = vsyncpa %s15, 0
    loop: start=0, step=1, limit=6
    $region2: #{tpu_custom_call.1} parent=1 // loop_pre_header
      _
    $region3: #{tpu_custom_call.1} parent=1 // loop_header
      %s18 = sphi 0, %s22
      %p19 = scmp.ge.s32.totalorder %s18, 6
      %s28 = sphi 0, %s30
      %s31 = sphi 0, %s28
      %s32 = sphi 0, %s31
      %s48 = sphi 0, %s32
      %s52 = sphi 0, %s52
      %s54 = sphi 0, %s52
      %s55 = sphi 0, %s54
      %s69 = sphi 0, %s55
      %s73 = sphi 0, %s73
      %s75 = sphi 0, %s73
      %s76 = sphi 0, %s75
      %s90 = sphi 0, %s76
      %s94 = sphi 0, %s94
      %s96 = sphi 0, %s94
      %s97 = sphi 0, %s96
      %s111 = sphi 0, %s97
      %s115 = sphi 0, %s115
      %s117 = sphi 0, %s115
      %s118 = sphi 0, %s117
      %s132 = sphi 0, %s118
      %s136 = sphi 0, %s136
      %s138 = sphi 0, %s136
      %s139 = sphi 0, %s138
      %s153 = sphi 0, %s139
      %s157 = sphi 0, %s157
      %s159 = sphi 0, %s157
      %s160 = sphi 0, %s159
      %s174 = sphi 0, %s160
      %s180 = sphi 0, %s182
      %s183 = sphi 0, %s180
      %s184 = sphi 0, %s183
      %s200 = sphi 0, %s184
    $region4: #{tpu_custom_call.1} parent=1 // loop_header_branch
      %21 = sbr.rel (%p19) target = $region8
    $region5: #{tpu_custom_call.1} parent=1 // loop_body
      %s23 = ssub.s32 %s18, 1
      %s24 = ssub.s32 %s18, 2
      %s25 = sadd.s32 %s18, 1
      %s26 = ssub.s32 %s18, %s25
      %p27 = scmp.eq.s32.totalorder %s26, 0
      %s29 = sadd.s32 %s28, 1
      %s30 = scalar_select %p27, %s28, %s29
      %p33 = pneg %p27
      %p34 = scmp.eq.s32.totalorder %s18, 3
      %p35 = por %p33, %p34
      %p36 = scmp.ne.s32.totalorder %s28, %s31
      %p37 = scmp.eq.s32.totalorder %s18, 0
      %p38 = por %p36, %p37
      %p39 = scmp.ne.s32.totalorder %s28, %s31
      %p40 = scmp.eq.s32.totalorder %s23, 3
      %p41 = por %p39, %p40
      %p42 = scmp.ne.s32.totalorder %s31, %s32
      %p43 = scmp.eq.s32.totalorder %s23, 0
      %p44 = por %p42, %p43
      %p45 = scmp.ne.s32.totalorder %s31, %s32
      %p46 = scmp.eq.s32.totalorder %s24, 3
      %p47 = por %p45, %p46
      %p49 = scmp.ne.s32.totalorder %s32, %s48
      %p50 = scmp.eq.s32.totalorder %s24, 0
      %p51 = por %p49, %p50
      %s53 = sadd.s32 %s52, 1
      %p56 = scmp.eq.s32.totalorder %s18, 3
      %p57 = scmp.ne.s32.totalorder %s52, %s54
      %p58 = scmp.eq.s32.totalorder %s18, 0
      %p59 = por %p57, %p58
      %p60 = scmp.ne.s32.totalorder %s52, %s54
      %p61 = scmp.eq.s32.totalorder %s23, 3
      %p62 = por %p60, %p61
      %p63 = scmp.ne.s32.totalorder %s54, %s55
      %p64 = scmp.eq.s32.totalorder %s23, 0
      %p65 = por %p63, %p64
      %p66 = scmp.ne.s32.totalorder %s54, %s55
      %p67 = scmp.eq.s32.totalorder %s24, 3
      %p68 = por %p66, %p67
      %p70 = scmp.ne.s32.totalorder %s55, %s69
      %p71 = scmp.eq.s32.totalorder %s24, 0
      %p72 = por %p70, %p71
      %s74 = sadd.s32 %s73, 1
      %p77 = scmp.eq.s32.totalorder %s18, 3
      %p78 = scmp.ne.s32.totalorder %s73, %s75
      %p79 = scmp.eq.s32.totalorder %s18, 0
      %p80 = por %p78, %p79
      %p81 = scmp.ne.s32.totalorder %s73, %s75
      %p82 = scmp.eq.s32.totalorder %s23, 3
      %p83 = por %p81, %p82
      %p84 = scmp.ne.s32.totalorder %s75, %s76
      %p85 = scmp.eq.s32.totalorder %s23, 0
      %p86 = por %p84, %p85
      %p87 = scmp.ne.s32.totalorder %s75, %s76
      %p88 = scmp.eq.s32.totalorder %s24, 3
      %p89 = por %p87, %p88
      %p91 = scmp.ne.s32.totalorder %s76, %s90
      %p92 = scmp.eq.s32.totalorder %s24, 0
      %p93 = por %p91, %p92
      %s95 = sadd.s32 %s94, 1
      %p98 = scmp.eq.s32.totalorder %s18, 3
      %p99 = scmp.ne.s32.totalorder %s94, %s96
      %p100 = scmp.eq.s32.totalorder %s18, 0
      %p101 = por %p99, %p100
      %p102 = scmp.ne.s32.totalorder %s94, %s96
      %p103 = scmp.eq.s32.totalorder %s23, 3
      %p104 = por %p102, %p103
      %p105 = scmp.ne.s32.totalorder %s96, %s97
      %p106 = scmp.eq.s32.totalorder %s23, 0
      %p107 = por %p105, %p106
      %p108 = scmp.ne.s32.totalorder %s96, %s97
      %p109 = scmp.eq.s32.totalorder %s24, 3
      %p110 = por %p108, %p109
      %p112 = scmp.ne.s32.totalorder %s97, %s111
      %p113 = scmp.eq.s32.totalorder %s24, 0
      %p114 = por %p112, %p113
      %s116 = sadd.s32 %s115, 1
      %p119 = scmp.eq.s32.totalorder %s18, 3
      %p120 = scmp.ne.s32.totalorder %s115, %s117
      %p121 = scmp.eq.s32.totalorder %s18, 0
      %p122 = por %p120, %p121
      %p123 = scmp.ne.s32.totalorder %s115, %s117
      %p124 = scmp.eq.s32.totalorder %s23, 3
      %p125 = por %p123, %p124
      %p126 = scmp.ne.s32.totalorder %s117, %s118
      %p127 = scmp.eq.s32.totalorder %s23, 0
      %p128 = por %p126, %p127
      %p129 = scmp.ne.s32.totalorder %s117, %s118
      %p130 = scmp.eq.s32.totalorder %s24, 3
      %p131 = por %p129, %p130
      %p133 = scmp.ne.s32.totalorder %s118, %s132
      %p134 = scmp.eq.s32.totalorder %s24, 0
      %p135 = por %p133, %p134
      %s137 = sadd.s32 %s136, 1
      %p140 = scmp.eq.s32.totalorder %s18, 3
      %p141 = scmp.ne.s32.totalorder %s136, %s138
      %p142 = scmp.eq.s32.totalorder %s18, 0
      %p143 = por %p141, %p142
      %p144 = scmp.ne.s32.totalorder %s136, %s138
      %p145 = scmp.eq.s32.totalorder %s23, 3
      %p146 = por %p144, %p145
      %p147 = scmp.ne.s32.totalorder %s138, %s139
      %p148 = scmp.eq.s32.totalorder %s23, 0
      %p149 = por %p147, %p148
      %p150 = scmp.ne.s32.totalorder %s138, %s139
      %p151 = scmp.eq.s32.totalorder %s24, 3
      %p152 = por %p150, %p151
      %p154 = scmp.ne.s32.totalorder %s139, %s153
      %p155 = scmp.eq.s32.totalorder %s24, 0
      %p156 = por %p154, %p155
      %s158 = sadd.s32 %s157, 1
      %p161 = scmp.eq.s32.totalorder %s18, 3
      %p162 = scmp.ne.s32.totalorder %s157, %s159
      %p163 = scmp.eq.s32.totalorder %s18, 0
      %p164 = por %p162, %p163
      %p165 = scmp.ne.s32.totalorder %s157, %s159
      %p166 = scmp.eq.s32.totalorder %s23, 3
      %p167 = por %p165, %p166
      %p168 = scmp.ne.s32.totalorder %s159, %s160
      %p169 = scmp.eq.s32.totalorder %s23, 0
      %p170 = por %p168, %p169
      %p171 = scmp.ne.s32.totalorder %s159, %s160
      %p172 = scmp.eq.s32.totalorder %s24, 3
      %p173 = por %p171, %p172
      %p175 = scmp.ne.s32.totalorder %s160, %s174
      %p176 = scmp.eq.s32.totalorder %s24, 0
      %p177 = por %p175, %p176
      %s178 = ssub.s32 %s18, %s25
      %p179 = scmp.eq.s32.totalorder %s178, 0
      %s181 = sadd.s32 %s180, 1
      %s182 = scalar_select %p179, %s180, %s181
      %p185 = pneg %p179
      %p186 = scmp.eq.s32.totalorder %s18, 3
      %p187 = por %p185, %p186
      %p188 = scmp.ne.s32.totalorder %s180, %s183
      %p189 = scmp.eq.s32.totalorder %s18, 0
      %p190 = por %p188, %p189
      %p191 = scmp.ne.s32.totalorder %s180, %s183
      %p192 = scmp.eq.s32.totalorder %s23, 3
      %p193 = por %p191, %p192
      %p194 = scmp.ne.s32.totalorder %s183, %s184
      %p195 = scmp.eq.s32.totalorder %s23, 0
      %p196 = por %p194, %p195
      %p197 = scmp.ne.s32.totalorder %s183, %s184
      %p198 = scmp.eq.s32.totalorder %s24, 3
      %p199 = por %p197, %p198
      %p201 = scmp.ne.s32.totalorder %s184, %s200
      %p202 = scmp.eq.s32.totalorder %s24, 0
      %p203 = por %p201, %p202
      %p204 = scmp.le.s32.totalorder 1, %s18
      %p205 = scmp.lt.s32.totalorder %s18, 5
      %p206 = pnand %p204, %p205
      %p207 = pneg %p206
      // Predicated region
      $region9: #{tpu_custom_call.1} parent=5 // pred_check
        _
      $region10: #{tpu_custom_call.1} parent=5 // pred_check_branch
        %209 = sbr.rel (%p206) target = $region12
      $region11: #{tpu_custom_call.1} parent=5 // pred_region
        %s210 = ssub.s32 %s18, 1
        // Predicated region
        $region13: #{tpu_custom_call.1} parent=11 // pred_check
          %p211 = pneg %p65
        $region14: #{tpu_custom_call.1} parent=11 // pred_check_branch
          %213 = sbr.rel (%p211) target = $region16
        $region15: #{tpu_custom_call.1} parent=11 // pred_region
          _
        $region16: #{tpu_custom_call.1} parent=11 // pred_fallthru
          _
        // Predicated region
        $region17: #{tpu_custom_call.1} parent=11 // pred_check
          %p214 = pneg %p86
        $region18: #{tpu_custom_call.1} parent=11 // pred_check_branch
          %216 = sbr.rel (%p214) target = $region20
        $region19: #{tpu_custom_call.1} parent=11 // pred_region
          _
        $region20: #{tpu_custom_call.1} parent=11 // pred_fallthru
          _
        // Predicated region
        $region21: #{tpu_custom_call.1} parent=11 // pred_check
          %p217 = pneg %p107
        $region22: #{tpu_custom_call.1} parent=11 // pred_check_branch
          %219 = sbr.rel (%p217) target = $region24
        $region23: #{tpu_custom_call.1} parent=11 // pred_region
          _
        $region24: #{tpu_custom_call.1} parent=11 // pred_fallthru
          _
        // Predicated region
        $region25: #{tpu_custom_call.1} parent=11 // pred_check
          %p220 = pneg %p128
        $region26: #{tpu_custom_call.1} parent=11 // pred_check_branch
          %222 = sbr.rel (%p220) target = $region28
        $region27: #{tpu_custom_call.1} parent=11 // pred_region
          _
        $region28: #{tpu_custom_call.1} parent=11 // pred_fallthru
          _
        // Predicated region
        $region29: #{tpu_custom_call.1} parent=11 // pred_check
          %p223 = pneg %p149
        $region30: #{tpu_custom_call.1} parent=11 // pred_check_branch
          %225 = sbr.rel (%p223) target = $region32
        $region31: #{tpu_custom_call.1} parent=11 // pred_region
          _
        $region32: #{tpu_custom_call.1} parent=11 // pred_fallthru
          _
        // Predicated region
        $region33: #{tpu_custom_call.1} parent=11 // pred_check
          %p226 = pneg %p170
        $region34: #{tpu_custom_call.1} parent=11 // pred_check_branch
          %228 = sbr.rel (%p226) target = $region36
        $region35: #{tpu_custom_call.1} parent=11 // pred_region
          _
        $region36: #{tpu_custom_call.1} parent=11 // pred_fallthru
          _
      $region12: #{tpu_custom_call.1} parent=5 // pred_fallthru
        _
      %p229 = scmp.lt.s32.totalorder %s18, 4
      // Predicated region
      $region37: #{tpu_custom_call.1} parent=5 // pred_check
        %p230 = pneg %p229
      $region38: #{tpu_custom_call.1} parent=5 // pred_check_branch
        %232 = sbr.rel (%p230) target = $region40
      $region39: #{tpu_custom_call.1} parent=5 // pred_region
        // Predicated region
        $region41: #{tpu_custom_call.1} parent=39 // pred_check
          %p233 = pneg %p38
        $region42: #{tpu_custom_call.1} parent=39 // pred_check_branch
          %235 = sbr.rel (%p233) target = $region44
        $region43: #{tpu_custom_call.1} parent=39 // pred_region
          %s236 = smul.u32 2, %s18
          %p237 = scmp.lt.s32.totalorder %s236, 7
          %s238 = scalar_select %p237, %s236, 7
          %s239 = scalar_lea.vmem %s0, %s238
          %s240 = smul.u32 2, %s18
        $region44: #{tpu_custom_call.1} parent=39 // pred_fallthru
          _
      $region40: #{tpu_custom_call.1} parent=5 // pred_fallthru
        _
      %p241 = scmp.le.s32.totalorder 1, %s18
      %p242 = scmp.lt.s32.totalorder %s18, 5
      %p243 = pnand %p241, %p242
      %p244 = pneg %p243
      // Predicated region
      $region45: #{tpu_custom_call.1} parent=5 // pred_check
        _
      $region46: #{tpu_custom_call.1} parent=5 // pred_check_branch
        %246 = sbr.rel (%p243) target = $region48
      $region47: #{tpu_custom_call.1} parent=5 // pred_region
        %s247 = ssub.s32 %s18, 1
        %s248 = smul.u32 2, %s23
        %p249 = scmp.lt.s32.totalorder %s248, 7
        %s250 = scalar_select %p249, %s248, 7
        %s251 = scalar_lea.vmem %s0, %s250
        %p252 = pneg %p44
        %p253 = pneg %p41
        %p254 = pneg %p65
        %p255 = pneg %p62
        %p256 = pneg %p86
        %p257 = pneg %p83
        %p258 = pneg %p107
        %p259 = pneg %p104
        %p260 = pneg %p128
        %p261 = pneg %p125
        %p262 = pneg %p149
        %p263 = pneg %p146
        %p264 = pneg %p170
        %p265 = pneg %p167
        %p266 = pneg %p196
        %p267 = pneg %p193
        %s268 = sand.u32 %s183, 1
        %s269 = scalar_lea.sflag [#allocation4], %s268
        %s270 = sand.u32 %s183, 1
        %s271 = smul.addr %s270, 2
        %s272 = scalar_lea.vmem [#allocation3], %s271
        %s273 = smul.u32 2, %s23
        %p274 = scmp.lt.s32.totalorder %s273, 7
        %s275 = scalar_select %p274, %s273, 7
        %s276 = scalar_lea.vmem %s0, %s275
        %s277 = smul.u32 2, %s23
        %s278 = smul.u32 2, %s23
        %v279 = vld [vmem:[%s276] sm:$0x3]
        %v280 = vld [vmem:[%s1] sm:$0xff]
        %v281 = vld [vmem:[%s1 + $0x8] sm:$0xff]
        %v282 = vld [vmem:[%s1 + $0x10] sm:$0xff]
        %v283 = vld [vmem:[%s1 + $0x18] sm:$0xff]
        %v284 = vld [vmem:[%s1 + $0x20] sm:$0xff]
        %286 = vset.pattern.permute.xlu0 0
        %287 = vperm.xlu0 %286, %v280
        %v288 = vpop.permute.xlu0 %287
        %291 = vset.pattern.permute.xlu0 0
        %292 = vperm.xlu0 %291, %v281
        %v293 = vpop.permute.xlu0 %292
        %296 = vset.pattern.permute.xlu0 0
        %297 = vperm.xlu0 %296, %v282
        %v298 = vpop.permute.xlu0 %297
        %301 = vset.pattern.permute.xlu0 0
        %302 = vperm.xlu0 %301, %v283
        %v303 = vpop.permute.xlu0 %302
        %306 = vset.pattern.permute.xlu0 0
        %307 = vperm.xlu0 %306, %v284
        %v308 = vpop.permute.xlu0 %307
        %v311 = vlaneseq
        %v312 = vshrl.u32 %v311, 7
        %v313 = vsub.s32 0, %v312
        %v314 = vrot.slane %v279, %v313
        %v315 = vlaneseq
        %v316 = vshrl.u32 %v315, 7
        %v317 = vsub.s32 1, %v316
        %v318 = vrot.slane %v279, %v317
        %v321 = vmul.f32 %v288, %v314
        %v322 = vmul.f32 %v288, %v318
        %v323 = vmul.f32 %v293, %v314
        %v324 = vmul.f32 %v293, %v318
        %v325 = vmul.f32 %v298, %v314
        %v326 = vmul.f32 %v298, %v318
        %v327 = vmul.f32 %v303, %v314
        %v328 = vmul.f32 %v303, %v318
        %v329 = vmul.f32 %v308, %v314
        %v330 = vmul.f32 %v308, %v318
        %v331 = vld [vmem:[%s2] sm:$0xff]
        %v332 = vld [vmem:[%s2 + $0x8] sm:$0xff]
        %v333 = vld [vmem:[%s2 + $0x10] sm:$0xff]
        %v334 = vld [vmem:[%s2 + $0x18] sm:$0xff]
        %v335 = vld [vmem:[%s2 + $0x20] sm:$0xff]
        %337 = vset.pattern.permute.xlu0 0
        %338 = vperm.xlu0 %337, %v331
        %v339 = vpop.permute.xlu0 %338
        %342 = vset.pattern.permute.xlu0 0
        %343 = vperm.xlu0 %342, %v332
        %v344 = vpop.permute.xlu0 %343
        %347 = vset.pattern.permute.xlu0 0
        %348 = vperm.xlu0 %347, %v333
        %v349 = vpop.permute.xlu0 %348
        %352 = vset.pattern.permute.xlu0 0
        %353 = vperm.xlu0 %352, %v334
        %v354 = vpop.permute.xlu0 %353
        %357 = vset.pattern.permute.xlu0 0
        %358 = vperm.xlu0 %357, %v335
        %v359 = vpop.permute.xlu0 %358
        %v361 = vadd.f32 %v321, %v339
        %v362 = vadd.f32 %v322, %v339
        %v363 = vadd.f32 %v323, %v344
        %v364 = vadd.f32 %v324, %v344
        %v365 = vadd.f32 %v325, %v349
        %v366 = vadd.f32 %v326, %v349
        %v367 = vadd.f32 %v327, %v354
        %v368 = vadd.f32 %v328, %v354
        %v369 = vadd.f32 %v329, %v359
        %v370 = vadd.f32 %v330, %v359
        %v371 = vmax.f32 %v361, 0.0
        %v372 = vmax.f32 %v362, 0.0
        %v373 = vmax.f32 %v363, 0.0
        %v374 = vmax.f32 %v364, 0.0
        %v375 = vmax.f32 %v365, 0.0
        %v376 = vmax.f32 %v366, 0.0
        %v377 = vmax.f32 %v367, 0.0
        %v378 = vmax.f32 %v368, 0.0
        %v379 = vmax.f32 %v369, 0.0
        %v380 = vmax.f32 %v370, 0.0
        %v381 = vld [vmem:[%s3] sm:$0xff]
        %v382 = vld [vmem:[%s3 + $0x8] sm:$0xff]
        %v383 = vld [vmem:[%s3 + $0x10] sm:$0xff]
        %v384 = vld [vmem:[%s3 + $0x18] sm:$0xff]
        %v385 = vld [vmem:[%s3 + $0x20] sm:$0xff]
        %v386 = vld [vmem:[%s4] sm:$0xff]
        %v387 = vld [vmem:[%s4 + $0x8] sm:$0xff]
        %v388 = vld [vmem:[%s4 + $0x10] sm:$0xff]
        %v389 = vld [vmem:[%s4 + $0x18] sm:$0xff]
        %v390 = vld [vmem:[%s4 + $0x20] sm:$0xff]
        %392 = vset.pattern.permute.xlu0 0
        %393 = vperm.xlu0 %392, %v386
        %v394 = vpop.permute.xlu0 %393
        %397 = vset.pattern.permute.xlu0 0
        %398 = vperm.xlu0 %397, %v387
        %v399 = vpop.permute.xlu0 %398
        %402 = vset.pattern.permute.xlu0 0
        %403 = vperm.xlu0 %402, %v388
        %v404 = vpop.permute.xlu0 %403
        %407 = vset.pattern.permute.xlu0 0
        %408 = vperm.xlu0 %407, %v389
        %v409 = vpop.permute.xlu0 %408
        %412 = vset.pattern.permute.xlu0 0
        %413 = vperm.xlu0 %412, %v390
        %v414 = vpop.permute.xlu0 %413
        %vm416 = vcmask 326656
        %v418 = vsel %vm416, %v381, 0
        %v421 = vsel %vm416, %v382, 0
        %v424 = vsel %vm416, %v383, 0
        %v427 = vsel %vm416, %v384, 0
        %v430 = vsel %vm416, %v385, 0
        %432 = vmatprep.subr.mxu0 %v372
        %433 = vmatpush1.msra.mxu0 %v371
        %434 = vmatprep.subr.mxu0 %v374
        %435 = vmatpush1.msra.mxu0 %v373
        %436 = vmatprep.subr.mxu0 %v376
        %437 = vmatpush1.msra.mxu0 %v375
        %438 = vmatprep.subr.mxu0 %v378
        %439 = vmatpush1.msra.mxu0 %v377
        %440 = vmatprep.subr.mxu0 %v380
        %441 = vmatpush1.msra.mxu0 %v379
        %442 = vmatprep.subr.mxu0 0.0
        %443 = vmatpush1.msra.mxu0 0.0
        %444 = vmatprep.subr.mxu0 0.0
        %445 = vmatpush1.msra.mxu0 0.0
        %446 = vmatprep.subr.mxu0 0.0
        %447 = vmatpush1.msra.mxu0 0.0
        %448 = vmatprep.subr.mxu0 0.0
        %449 = vmatpush1.msra.mxu0 0.0
        %450 = vmatprep.subr.mxu0 0.0
        %451 = vmatpush1.msra.mxu0 0.0
        %452 = vmatprep.subr.mxu0 0.0
        %453 = vmatpush1.msra.mxu0 0.0
        %454 = vmatprep.subr.mxu0 0.0
        %455 = vmatpush1.msra.mxu0 0.0
        %456 = vmatprep.subr.mxu0 0.0
        %457 = vmatpush1.msra.mxu0 0.0
        %458 = vmatprep.subr.mxu0 0.0
        %459 = vmatpush1.msra.mxu0 0.0
        %460 = vmatprep.subr.mxu0 0.0
        %461 = vmatpush1.msra.mxu0 0.0
        %462 = vmatprep.subr.mxu0 0.0
        %463 = vmatpush1.msra.mxu0 0.0
        %464 = vmatprep.subr.mxu0 0.0
        %465 = vmatpush1.msra.mxu0 0.0
        %466 = vmatprep.subr.mxu0 0.0
        %467 = vmatpush1.msra.mxu0 0.0
        %468 = vmatprep.subr.mxu0 0.0
        %469 = vmatpush1.msra.mxu0 0.0
        %470 = vmatprep.subr.mxu0 0.0
        %471 = vmatpush1.msra.mxu0 0.0
        %472 = vmatprep.subr.mxu0 0.0
        %473 = vmatpush1.msra.mxu0 0.0
        %474 = vmatprep.subr.mxu0 0.0
        %475 = vmatpush1.msra.mxu0 0.0
        %476 = vmatprep.subr.mxu0 0.0
        %477 = vmatpush1.msra.mxu0 0.0
        %478 = vmatprep.subr.mxu0 0.0
        %479 = vmatpush1.msra.mxu0 0.0
        %480 = vmatprep.subr.mxu0 0.0
        %481 = vmatpush1.msra.mxu0 0.0
        %482 = vmatprep.subr.mxu0 0.0
        %483 = vmatpush1.msra.mxu0 0.0
        %484 = vmatprep.subr.mxu0 0.0
        %485 = vmatpush1.msra.mxu0 0.0
        %486 = vmatprep.subr.mxu0 0.0
        %487 = vmatpush1.msra.mxu0 0.0
        %488 = vmatprep.subr.mxu0 0.0
        %489 = vmatpush1.msra.mxu0 0.0
        %490 = vmatprep.subr.mxu0 0.0
        %491 = vmatpush1.msra.mxu0 0.0
        %492 = vmatprep.subr.mxu0 0.0
        %493 = vmatpush1.msra.mxu0 0.0
        %494 = vmatprep.subr.mxu0 0.0
        %495 = vmatpush1.msra.mxu0 0.0
        %496 = vmatprep.mubr.f32.mxu0 0.0
        %497 = vmatmul.mubr.f32.gmra.mrb[0].mxu0 %v418
        %v498 = vpop.f32.mrb[0].mxu0
        %v499 = vadd.f32 %v394, %v498
        %v500 = vpop.f32.mrb[0].mxu0
        %v501 = vadd.f32 %v394, %v500
        %502 = vmatprep.mubr.f32.mxu0 0.0
        %503 = vmatmul.mubr.f32.gmra.mrb[0].mxu0 %v421
        %v504 = vpop.f32.mrb[0].mxu0
        %v505 = vadd.f32 %v399, %v504
        %v506 = vpop.f32.mrb[0].mxu0
        %v507 = vadd.f32 %v399, %v506
        %508 = vmatprep.mubr.f32.mxu0 0.0
        %509 = vmatmul.mubr.f32.gmra.mrb[0].mxu0 %v424
        %v510 = vpop.f32.mrb[0].mxu0
        %v511 = vadd.f32 %v404, %v510
        %v512 = vpop.f32.mrb[0].mxu0
        %v513 = vadd.f32 %v404, %v512
        %514 = vmatprep.mubr.f32.mxu0 0.0
        %515 = vmatmul.mubr.f32.gmra.mrb[0].mxu0 %v427
        %v516 = vpop.f32.mrb[0].mxu0
        %v517 = vadd.f32 %v409, %v516
        %v518 = vpop.f32.mrb[0].mxu0
        %v519 = vadd.f32 %v409, %v518
        %520 = vmatprep.mubr.f32.mxu0 0.0
        %521 = vmatmul.mubr.f32.gmra.mrb[0].mxu0 %v430
        %v522 = vpop.f32.mrb[0].mxu0
        %v523 = vadd.f32 %v414, %v522
        %v524 = vpop.f32.mrb[0].mxu0
        %v525 = vadd.f32 %v414, %v524
        %526 = vdwg.mxu0
        %v527 = vmax.f32 %v499, 0.0
        %v528 = vmax.f32 %v501, 0.0
        %v529 = vmax.f32 %v505, 0.0
        %v530 = vmax.f32 %v507, 0.0
        %v531 = vmax.f32 %v511, 0.0
        %v532 = vmax.f32 %v513, 0.0
        %v533 = vmax.f32 %v517, 0.0
        %v534 = vmax.f32 %v519, 0.0
        %v535 = vmax.f32 %v523, 0.0
        %v536 = vmax.f32 %v525, 0.0
        %v537 = vld [vmem:[%s5] sm:$0xff]
        %v538 = vld [vmem:[%s5 + $0x8] sm:$0xff]
        %v539 = vld [vmem:[%s5 + $0x10] sm:$0xff]
        %v540 = vld [vmem:[%s5 + $0x18] sm:$0xff]
        %v541 = vld [vmem:[%s5 + $0x20] sm:$0xff]
        %543 = vset.pattern.permute.xlu0 0
        %544 = vperm.xlu0 %543, %v537
        %v545 = vpop.permute.xlu0 %544
        %548 = vset.pattern.permute.xlu0 0
        %549 = vperm.xlu0 %548, %v538
        %v550 = vpop.permute.xlu0 %549
        %553 = vset.pattern.permute.xlu0 0
        %554 = vperm.xlu0 %553, %v539
        %v555 = vpop.permute.xlu0 %554
        %558 = vset.pattern.permute.xlu0 0
        %559 = vperm.xlu0 %558, %v540
        %v560 = vpop.permute.xlu0 %559
        %563 = vset.pattern.permute.xlu0 0
        %564 = vperm.xlu0 %563, %v541
        %v565 = vpop.permute.xlu0 %564
        %v567 = vmul.f32 %v545, %v527
        %v568 = vmul.f32 %v545, %v528
        %v569 = vmul.f32 %v550, %v529
        %v570 = vmul.f32 %v550, %v530
        %v571 = vmul.f32 %v555, %v531
        %v572 = vmul.f32 %v555, %v532
        %v573 = vmul.f32 %v560, %v533
        %v574 = vmul.f32 %v560, %v534
        %v575 = vmul.f32 %v565, %v535
        %v576 = vmul.f32 %v565, %v536
        %v577 = vadd.f32 %v567, %v569
        %v578 = vadd.f32 %v577, %v571
        %v579 = vadd.f32 %v578, %v573
        %v580 = vadd.f32 %v579, %v575
        %v581 = vrot.slane %v580, 4
        %v582 = vadd.f32 %v580, %v581
        %v583 = vrot.slane %v582, 2
        %v584 = vadd.f32 %v582, %v583
        %v585 = vrot.slane %v584, 1
        %v586 = vadd.f32 %v584, %v585
        %v587 = vadd.f32 %v568, %v570
        %v588 = vadd.f32 %v587, %v572
        %v589 = vadd.f32 %v588, %v574
        %v590 = vadd.f32 %v589, %v576
        %v591 = vrot.slane %v590, 4
        %v592 = vadd.f32 %v590, %v591
        %v593 = vrot.slane %v592, 2
        %v594 = vadd.f32 %v592, %v593
        %v595 = vrot.slane %v594, 1
        %v596 = vadd.f32 %v594, %v595
        %v597 = vld [vmem:[#allocation2] sm:$0x1]
        %599 = vset.pattern.permute.xlu0 0
        %600 = vperm.xlu0 %599, %v597
        %v601 = vpop.permute.xlu0 %600
        %v603 = vlaneseq
        %v604 = vshrl.u32 %v603, 7
        %v605 = vsub.s32 0, %v604
        %v606 = vrot.slane %v601, %v605
        %v607 = vadd.f32 %v586, %v606
        %v608 = vadd.f32 %v596, %v606
        %v611 = vcombine.low %v607, %v608
        %v613 = vunpack.c.l.s4 1966171168
        %v614 = vunpack.c.0.s8 %v613
        %v615 = vlaneseq
        %v616 = vshrl.u32 %v615, 7
        %v617 = vsub.s32 %v614, %v616
        %v618 = vrot.slane %v611, %v617
        %v620 = vunpack.c.l.s4 1966171168
        %v621 = vunpack.c.0.s8 %v620
        %v622 = vlaneseq
        %v623 = vshrl.u32 %v622, 7
        %v624 = vsub.s32 %v621, %v623
        %v625 = vrot.slane %v618, %v624
        %v627 = vlaneseq
        %vm628 = vcmp.ge.s32.totalorder %v627, 0
        %vm629 = vcmp.lt.s32.totalorder %v627, 256
        %vm630 = vmand %vm628, %vm629
        %631 = vst.msk [vmem:[%s272] sm:$0x3] %vm630, %v625
        %s632 = sand.u32 %s183, 1
        %s633 = scalar_lea.sflag [#allocation4], %s632
        %s634 = sand.u32 %s183, 1
        %s635 = smul.addr %s634, 2
        %s636 = scalar_lea.vmem [#allocation3], %s635
        // Predicated region
        $region49: #{tpu_custom_call.1} parent=47 // pred_check
          %p637 = pneg %p193
        $region50: #{tpu_custom_call.1} parent=47 // pred_check_branch
          %639 = sbr.rel (%p637) target = $region52
        $region51: #{tpu_custom_call.1} parent=47 // pred_region
          %s640 = smul.u32 2, %s23
          %s642 = ssub.s32 32, 32
          %643 = vsyncadd %s633, %s642
          %s644 = smul.addr %s640, 16
          %s645 = scalar_lea.hbm %s7, %s644
          %s647 = sshll.u32 %s636, 4
          %s648 = int_to_ptr.vmem [resolvable:$true] %s647
          %650 = dma.vmem_to_hbm [thread:$0]  %s648, 32, %s645, %s633
        $region52: #{tpu_custom_call.1} parent=47 // pred_fallthru
          _
      $region48: #{tpu_custom_call.1} parent=5 // pred_fallthru
        _
      %p651 = scmp.le.s32.totalorder 2, %s18
      // Predicated region
      $region53: #{tpu_custom_call.1} parent=5 // pred_check
        %p652 = pneg %p651
      $region54: #{tpu_custom_call.1} parent=5 // pred_check_branch
        %654 = sbr.rel (%p652) target = $region56
      $region55: #{tpu_custom_call.1} parent=5 // pred_region
        %s655 = ssub.s32 %s18, 2
        // Predicated region
        $region57: #{tpu_custom_call.1} parent=55 // pred_check
          %p656 = pneg %p199
        $region58: #{tpu_custom_call.1} parent=55 // pred_check_branch
          %658 = sbr.rel (%p656) target = $region60
        $region59: #{tpu_custom_call.1} parent=55 // pred_region
          %s659 = sand.u32 %s184, 1
          %s660 = scalar_lea.sflag [#allocation4], %s659
          %s661 = sand.u32 %s184, 1
          %s662 = smul.addr %s661, 2
          %s663 = scalar_lea.vmem [#allocation3], %s662
          %664 = dma.done %s660, 32
        $region60: #{tpu_custom_call.1} parent=55 // pred_fallthru
          _
      $region56: #{tpu_custom_call.1} parent=5 // pred_fallthru
        _
    $region6: #{tpu_custom_call.1} parent=1 // loop_footer
      %s22 = sadd.s32 1, %s18
    $region7: #{tpu_custom_call.1} parent=1 // loop_footer_branch
      %17 = sbr.rel target = $region3
    $region8: #{tpu_custom_call.1} parent=1 // loop_exit
      _
    %665 = vsyncpa [#allocation4], 1
    %s666 = scalar_lea.sflag [#allocation4], 1
    %667 = vsyncpa %s666, 1

</llo_original>
